<compile_context>
chip_gen: v7x
topology: tpu7x:2x2x1
jax: 0.10.0
libtpu: 0.0.40
codegen_flags: <defaults>
</compile_context>

<pallas_src>
import numpy as np
import jax
import jax.numpy as jnp
from jax.experimental import pallas as pl
from jax.experimental.pallas import tpu as pltpu

MEMORY_SIZE = 70      # fixed by the torch module
M_PAD = 128           # memory rows padded to a full lane width
_VMEM_BUDGET = 24 * 1024 * 1024   # tile-sizing budget (fits v5e scoped default headroom)


# ----------------------------------------------------------------------------
# Kernels
# ----------------------------------------------------------------------------
def _feat_memory_kernel(pool_ref, mem_ref, feat_ref):
    """feat = ((pool @ mem.T) * rsqrt(||pool||^2)) @ mem   (train=False path)."""
    pool = pool_ref[...]                                               # [TN, D]
    mem = mem_ref[...]                                                 # [Mp, D] (resident)
    # inner_product(): row-wise dot products with every (padded) memory slot
    ip = jax.lax.dot_general(pool, mem,
                             dimension_numbers=(((1,), (1,)), ((), ())),
                             preferred_element_type=jnp.float32)       # [TN, Mp]
    inv_mag = jax.lax.rsqrt(jnp.sum(pool * pool, axis=1, keepdims=True))   # EUP
    cs = ip * inv_mag                                                  # [TN, Mp]
    # memory_matrix.sum(dim=1) == cs @ mem  (padded rows of mem are zero)
    feat_ref[...] = jnp.dot(cs, mem, preferred_element_type=jnp.float32)


def _feat_memory_train_kernel(pool_ref, mem_ref, gram_ref, gdiag_ref,
                              feat_ref, loss_ref):
    """train=True path: feat plus per-row orthogonality-loss contributions."""
    pool = pool_ref[...]                                               # [TN, D]
    mem = mem_ref[...]                                                 # [Mp, D]
    ip = jax.lax.dot_general(pool, mem,
                             dimension_numbers=(((1,), (1,)), ((), ())),
                             preferred_element_type=jnp.float32)       # [TN, Mp]
    inv_mag = jax.lax.rsqrt(jnp.sum(pool * pool, axis=1, keepdims=True))
    cs = ip * inv_mag                                                  # [TN, Mp]
    feat_ref[...] = jnp.dot(cs, mem, preferred_element_type=jnp.float32)

    # ---- orthogonality loss, factorized through the memory Gram matrix ----
    # memory_matrix[n,i,:] = cs[n,i] * mem[i,:]
    #   => orth[n,i,:] = sign(cs[n,i]) * mem[i,:]/||mem[i]||
    #   => sym[n,i,j]  = s_i s_j * Ghat[i,j]
    #   => ||sym[n]-I||^2 = u^T (Ghat*Ghat) u - 2 u.diag(Ghat) + 70, u = s*s
    # sign(0) is defined as +1 (torch would produce NaN for cs == 0).
    gram = gram_ref[...]                                               # [Mp, Mp] (zero-padded)
    gdiag = gdiag_ref[...]                                             # [1, Mp]  (zero-padded)
    s = jnp.where(cs >= 0.0, jnp.float32(1.0), jnp.float32(-1.0))      # [TN, Mp]
    u = s * s                                                          # [TN, Mp]
    g2 = gram * gram                                                   # [Mp, Mp]
    quad = jnp.sum(jnp.dot(u, g2, preferred_element_type=jnp.float32) * u,
                   axis=1, keepdims=True)                              # [TN, 1]
    cross = jnp.sum(u * gdiag, axis=1, keepdims=True)                  # [TN, 1]
    loss_ref[...] = quad - 2.0 * cross + jnp.float32(MEMORY_SIZE)


# ----------------------------------------------------------------------------
# Tiling / cost helpers
# ----------------------------------------------------------------------------
def _pick_tiling(n, d, m_pad, tile_rows=None):
    """Pick batch-tile rows (multiple of 8 when tiling) and padded batch size."""
    if tile_rows is None:
        bytes_per_row = 4 * d
        resident = 4 * (m_pad * d + m_pad * m_pad + m_pad)      # memory + gram + diag
        stream = max(_VMEM_BUDGET - resident, 8 * 4 * bytes_per_row)
        # 4 double-buffered streamed tiles (pool x2, feat x2)
        max_rows = max(8, stream // (4 * bytes_per_row))
        tile_rows = int(min(512, max_rows))
        tile_rows = max(8, (tile_rows // 8) * 8)
    tile_rows = int(tile_rows)
    if n <= tile_rows:
        return n, n                      # single full-extent block (always legal)
    n_pad = ((n + tile_rows - 1) // tile_rows) * tile_rows
    return tile_rows, n_pad


def _vmem_limit(tn, d, m_pad):
    resident = 4 * (m_pad * d + m_pad * m_pad + m_pad)
    streamed = 4 * (2 * 2 * tn * d + 2 * tn)     # double-buffered pool/feat (+loss rows)
    need = resident + streamed + (2 << 20)
    return int(min(max(need, 32 << 20), 64 << 20))   # explicit; v7x physical = 64 MiB


def _cost(n_pad, m_pad, d, train):
    flops = 4 * n_pad * m_pad * d + 3 * n_pad * d
    bytes_accessed = 4 * (2 * n_pad * d + m_pad * d)
    if train:
        flops += 2 * n_pad * m_pad * m_pad + 6 * n_pad * m_pad
        bytes_accessed += 4 * (m_pad * m_pad + m_pad + n_pad)
    return pl.CostEstimate(flops=int(flops), transcendentals=int(n_pad),
                           bytes_accessed=int(bytes_accessed))


# ----------------------------------------------------------------------------
# Module wrapper
# ----------------------------------------------------------------------------
class OrthogonalEmbeddedMemory:
    """JAX/Pallas port of the torch module (already-initialized memory path)."""

    def __init__(self, memory_shape, key):
        self.memory_size = MEMORY_SIZE
        self.memory_shape = tuple(memory_shape)
        self.memory_capacity = int(np.prod(memory_shape))
        # deterministic orthogonal init (rows of memory are orthonormal),
        # mirroring nn.init.orthogonal_ on a [70, D] parameter.
        a = jax.random.normal(key, (self.memory_capacity, self.memory_size),
                              dtype=jnp.float32)
        q, _ = jnp.linalg.qr(a)
        self._set_memory(jnp.asarray(q.T, dtype=jnp.float32))            # [70, D]
        # TODO(synk): the torch module's lazy "Memory Initialize" (overwriting the
        # parameter in-place with the first batch + print) is a stateful side effect
        # with no clean functional/Pallas equivalent; we model the isinitialize=True path.

    def _set_memory(self, memory):
        """Set memory and precompute padded memory + Gram factors (done once)."""
        m, d = self.memory_size, self.memory_capacity
        assert memory.shape == (m, d)
        memory = memory.astype(jnp.float32)
        self.memory = memory
        hi = jax.lax.Precision.HIGHEST
        mem_hat = memory * jax.lax.rsqrt(jnp.sum(memory * memory, axis=1, keepdims=True))
        gram = jnp.dot(mem_hat, mem_hat.T, precision=hi)                 # [70, 70]
        self._mem_pad = jnp.zeros((M_PAD, d), jnp.float32).at[:m].set(memory)
        self._gram_pad = jnp.zeros((M_PAD, M_PAD), jnp.float32).at[:m, :m].set(gram)
        self._gdiag_pad = jnp.zeros((1, M_PAD), jnp.float32).at[0, :m].set(jnp.diagonal(gram))

    def __call__(self, feat_adv, train=False, *, tile_rows=None):
        d = self.memory_capacity
        pool = feat_adv.reshape(-1, d).astype(jnp.float32)
        n = pool.shape[0]
        mp = M_PAD

        tn, n_pad = _pick_tiling(n, d, mp, tile_rows)
        if n_pad > n:
            # pad with benign (all-ones) rows so padded rows stay finite;
            # their outputs are sliced off below.
            pool = jnp.concatenate(
                [pool, jnp.ones((n_pad - n, d), jnp.float32)], axis=0)
        num_tiles = n_pad // tn

        cparams = pltpu.CompilerParams(
            dimension_semantics=("parallel",),
            vmem_limit_bytes=_vmem_limit(tn, d, mp))

        if not train:
            feat = pl.pallas_call(
                _feat_memory_kernel,
                grid=(num_tiles,),
                out_shape=jax.ShapeDtypeStruct((n_pad, d), jnp.float32),
                in_specs=[pl.BlockSpec((tn, d), lambda i: (i, 0)),
                          pl.BlockSpec((mp, d), lambda i: (0, 0))],
                out_specs=pl.BlockSpec((tn, d), lambda i: (i, 0)),
                compiler_params=cparams,
                cost_estimate=_cost(n_pad, mp, d, train=False),
            )(pool, self._mem_pad)
            return feat[:n].reshape(feat_adv.shape)

        feat, loss_rows = pl.pallas_call(
            _feat_memory_train_kernel,
            grid=(num_tiles,),
            out_shape=(jax.ShapeDtypeStruct((n_pad, d), jnp.float32),
                       jax.ShapeDtypeStruct((n_pad, 1), jnp.float32)),
            in_specs=[pl.BlockSpec((tn, d), lambda i: (i, 0)),
                      pl.BlockSpec((mp, d), lambda i: (0, 0)),
                      pl.BlockSpec((mp, mp), lambda i: (0, 0)),
                      pl.BlockSpec((1, mp), lambda i: (0, 0))],
            out_specs=(pl.BlockSpec((tn, d), lambda i: (i, 0)),
                       pl.BlockSpec((tn, 1), lambda i: (i, 0))),
            compiler_params=cparams,
            cost_estimate=_cost(n_pad, mp, d, train=True),
        )(pool, self._mem_pad, self._gram_pad, self._gdiag_pad)

        loss = jnp.sum(loss_rows[:n, 0])
        return feat[:n].reshape(feat_adv.shape), loss


# ----------------------------------------------------------------------------
# Pure-JAX reference mirroring the torch forward (full, unfactorized formula)
# ----------------------------------------------------------------------------
def _reference(feat_adv, memory, train=False):
    hi = jax.lax.Precision.HIGHEST
    pool = feat_adv.reshape(-1, memory.shape[1]).astype(jnp.float32)
    ip = jnp.dot(pool, memory.T, precision=hi)
    mag = jnp.sqrt(jnp.sum(pool * pool, axis=1, keepdims=True))
    cs = ip / mag
    feat = jnp.dot(cs, memory, precision=hi).reshape(feat_adv.shape)
    if not train:
        return feat
    mm = cs[:, :, None] * memory[None, :, :]
    orth = mm / jnp.sqrt(jnp.sum(mm * mm, axis=2, keepdims=True))
    sym = jnp.einsum('bmd,bnd->bmn', orth, orth, precision=hi)
    eye = jnp.eye(memory.shape[0], dtype=jnp.float32)
    loss = jnp.sum((sym - eye[None]) ** 2)
    return feat, loss


if __name__ == "__main__":
    key = jax.random.PRNGKey(0)
    k_mem, k_x1, k_x2, k_m2 = jax.random.split(key, 4)

    C, H, W = 4, 16, 16                                 # memory_capacity = 1024
    memory_shape = (C, H, W)
    module = OrthogonalEmbeddedMemory(memory_shape, k_mem)

    # ---- test 1: B=2, single tile, inference + train paths -----------------
    feat_adv = jax.random.normal(k_x1, (2, C, H, W), dtype=jnp.float32)

    feat = jax.block_until_ready(module(feat_adv))
    feat_ref = _reference(feat_adv, module.memory)
    np.testing.assert_allclose(np.asarray(feat), np.asarray(feat_ref),
                               rtol=2e-4, atol=2e-4)

    feat_t, loss_t = module(feat_adv, train=True)
    feat_t = jax.block_until_ready(feat_t)
    loss_t = jax.block_until_ready(loss_t)
    feat_tr, loss_tr = _reference(feat_adv, module.memory, train=True)
    np.testing.assert_allclose(np.asarray(feat_t), np.asarray(feat_tr),
                               rtol=2e-4, atol=2e-4)
    np.testing.assert_allclose(np.asarray(loss_t), np.asarray(loss_tr),
                               rtol=1e-3, atol=1e-3)

    # ---- test 2: B=10 with forced tile_rows=8 (multi-tile grid + padding) ---
    feat_adv2 = jax.random.normal(k_x2, (10, C, H, W), dtype=jnp.float32)
    feat2 = jax.block_until_ready(module(feat_adv2, tile_rows=8))
    feat2_ref = _reference(feat_adv2, module.memory)
    np.testing.assert_allclose(np.asarray(feat2), np.asarray(feat2_ref),
                               rtol=2e-4, atol=2e-4)
    feat2_t, loss2_t = module(feat_adv2, train=True, tile_rows=8)
    feat2_t = jax.block_until_ready(feat2_t)
    loss2_t = jax.block_until_ready(loss2_t)
    feat2_tr, loss2_tr = _reference(feat_adv2, module.memory, train=True)
    np.testing.assert_allclose(np.asarray(feat2_t), np.asarray(feat2_tr),
                               rtol=2e-4, atol=2e-4)
    np.testing.assert_allclose(np.asarray(loss2_t), np.asarray(loss2_tr),
                               rtol=1e-3, atol=1e-3)

    # ---- test 3: non-orthogonal memory so the loss is meaningfully nonzero --
    rand_mem = jax.random.normal(k_m2, (MEMORY_SIZE, module.memory_capacity),
                                 dtype=jnp.float32)
    module._set_memory(rand_mem)
    feat3_t, loss3_t = module(feat_adv, train=True)
    feat3_t = jax.block_until_ready(feat3_t)
    loss3_t = jax.block_until_ready(loss3_t)
    feat3_tr, loss3_tr = _reference(feat_adv, module.memory, train=True)
    np.testing.assert_allclose(np.asarray(feat3_t), np.asarray(feat3_tr),
                               rtol=2e-4, atol=2e-4)
    np.testing.assert_allclose(np.asarray(loss3_t), np.asarray(loss3_tr),
                               rtol=1e-3, atol=1e-3)

    print("KERNEL_OK")
</pallas_src>

<mosaic_0001>
module attributes {stable_mosaic.version = 11 : i64} {
  func.func @_feat_memory_kernel(%arg0: i32, %arg1: memref<2x1024xf32, #tpu.memory_space<vmem>>, %arg2: memref<128x1024xf32, #tpu.memory_space<vmem>>, %arg3: memref<2x1024xf32, #tpu.memory_space<vmem>>) attributes {dimension_semantics = [#tpu.dimension_semantics<parallel>], iteration_bounds = array<i64: 1>, scalar_prefetch = 0 : i64, scratch_operands = 0 : i64, tpu.core_type = #tpu.core_type<tc>, window_params = [{transform_indices = @transform_0, window_bounds = array<i64: 2, 1024>}, {pipeline_mode = #tpu.pipeline_mode<synchronous>, transform_indices = @transform_1, window_bounds = array<i64: 128, 1024>}, {transform_indices = @transform_2, window_bounds = array<i64: 2, 1024>}]} {
    %c0 = arith.constant 0 : index
    %c0_0 = arith.constant 0 : index
    %0 = vector.load %arg1[%c0, %c0_0] : memref<2x1024xf32, #tpu.memory_space<vmem>>, vector<2x1024xf32>
    %c0_1 = arith.constant 0 : index
    %c0_2 = arith.constant 0 : index
    %1 = vector.load %arg2[%c0_1, %c0_2] : memref<128x1024xf32, #tpu.memory_space<vmem>>, vector<128x1024xf32>
    %cst = arith.constant dense<0.000000e+00> : vector<2x128xf32>
    %2 = tpu.matmul %0, %1, %cst {dimension_numbers = #tpu.dot_dimension_numbers<[1], [1], [0], [0], [0, 0, 1, 0], [], []>} : vector<2x1024xf32>, vector<128x1024xf32>, vector<2x128xf32> -> vector<2x128xf32>
    %3 = arith.mulf %0, %0 : vector<2x1024xf32>
    %cst_3 = arith.constant dense<0.000000e+00> : vector<2xf32>
    %4 = vector.multi_reduction <add>, %3, %cst_3 [1] : vector<2x1024xf32> to vector<2xf32>
    %5 = vector.shape_cast %4 : vector<2xf32> to vector<2x1xf32>
    %6 = math.rsqrt %5 : vector<2x1xf32>
    %7 = vector.broadcast %6 : vector<2x1xf32> to vector<2x128xf32>
    %8 = arith.mulf %2, %7 : vector<2x128xf32>
    %cst_4 = arith.constant dense<0.000000e+00> : vector<2x1024xf32>
    %9 = tpu.matmul %8, %1, %cst_4 {dimension_numbers = #tpu.dot_dimension_numbers<[1], [0], [0], [1], [0, 0, 1, 1], [], []>} : vector<2x128xf32>, vector<128x1024xf32>, vector<2x1024xf32> -> vector<2x1024xf32>
    %c0_5 = arith.constant 0 : index
    %c0_6 = arith.constant 0 : index
    %10 = vector.load %arg3[%c0_5, %c0_6] : memref<2x1024xf32, #tpu.memory_space<vmem>>, vector<2x1024xf32>
    tpu.vector_store %arg3[%c0_5, %c0_6], %9 {strides = array<i32>} : memref<2x1024xf32, #tpu.memory_space<vmem>>, vector<2x1024xf32>,
    return
  }
  func.func @transform_0(%arg0: i32) -> (i32, i32) {
    %c0_i32 = arith.constant 0 : i32
    %c0_i32_0 = arith.constant 0 : i32
    return %arg0, %c0_i32 : i32, i32
  }
  func.func @transform_1(%arg0: i32) -> (i32, i32) {
    %c0_i32 = arith.constant 0 : i32
    %c0_i32_0 = arith.constant 0 : i32
    %c0_i32_1 = arith.constant 0 : i32
    return %c0_i32, %c0_i32_0 : i32, i32
  }
  func.func @transform_2(%arg0: i32) -> (i32, i32) {
    %c0_i32 = arith.constant 0 : i32
    %c0_i32_0 = arith.constant 0 : i32
    return %arg0, %c0_i32 : i32, i32
  }
}

</mosaic_0001>

<llo_original>
// kernel: tpu_custom_call.1
$region0: #{tpu_custom_call.1}
  #allocation0 [shape = 'u32[]', space=smem, size = 0x4, offset = 0x4, fixed_abs, tag = 'smem constant byte address 0x4 - core index']
  #allocation1 [shape = 'u32[144,128]{1,0:T(1,128)}', space=vmem, size = 0x12000, scoped, tag = 'internal scratch']
  %s0 = inlined_call_operand.hbm [shape: f32[2,1024], index: 0, kind: input, shape index: {}]
  %s1 = inlined_call_operand.hbm [shape: f32[128,1024], index: 1, kind: input, shape index: {}]
  %s2 = inlined_call_operand.hbm [shape: f32[2,1024], index: 2, kind: output, shape index: {}]
  %s3 = sld [smem:[#allocation0]]
  $region26: #{tpu_custom_call.1} parent=0
    _
  %s5 = ssub.s32 1, %s3
  %s6 = scalar_select 0, %s5, %s3
  $region1: #{tpu_custom_call.1} parent=0
    #allocation2 [shape = 'u8[8192]{0}', space=vmem, size = 0x2000, scoped, tag = 'input window, operand 0, single buffered']
    #allocation3 [shape = 's32[1]{0}', space=sflag, size = 0x4, scoped, tag = 'scoped memory for tpu_custom_call.1']
    #allocation4 [shape = 's32[1]{0}', space=sflag, size = 0x4, scoped, tag = 'scoped memory for tpu_custom_call.1']
    #allocation5 [shape = 'u8[524288]{0}', space=vmem, size = 0x80000, scoped, tag = 'input window, operand 1, single buffered']
    #allocation6 [shape = 's32[1]{0}', space=sflag, size = 0x4, scoped, tag = 'scoped memory for tpu_custom_call.1']
    #allocation7 [shape = 'u8[8192]{0}', space=vmem, size = 0x2000, scoped, tag = 'output window, operand 0, single buffered']
    %7 = vsyncpa [#allocation3], 0
    %8 = vsyncpa [#allocation6], 0
    %9 = vsyncpa [#allocation4], 0
    // Predicated region
    $region2: #{tpu_custom_call.1} parent=1 // pred_check
      _
    $region3: #{tpu_custom_call.1} parent=1 // pred_check_branch
      %11 = sbr.rel (0) target = $region5
    $region4: #{tpu_custom_call.1} parent=1 // pred_region
      %s13 = ssub.s32 256, 256
      %14 = vsyncadd [#allocation3], %s13
      %s16 = sshll.u32 [#allocation2], 4
      %s17 = int_to_ptr.vmem [resolvable:$true] %s16
      %19 = dma.hbm_to_vmem [thread:$0]  %s0, 256, %s17, [#allocation3]
    $region5: #{tpu_custom_call.1} parent=1 // pred_fallthru
      _
    // Predicated region
    $region6: #{tpu_custom_call.1} parent=1 // pred_check
      _
    $region7: #{tpu_custom_call.1} parent=1 // pred_check_branch
      %21 = sbr.rel (0) target = $region9
    $region8: #{tpu_custom_call.1} parent=1 // pred_region
      %s23 = ssub.s32 16384, 16384
      %24 = vsyncadd [#allocation6], %s23
      %s25 = sshll.u32 [#allocation5], 4
      %s26 = int_to_ptr.vmem [resolvable:$true] %s25
      %31 = dma.hbm_to_vmem [thread:$0]  %s1, 16384, %s26, [#allocation6], 1024, 1024, 64
    $region9: #{tpu_custom_call.1} parent=1 // pred_fallthru
      _
    // Predicated region
    $region10: #{tpu_custom_call.1} parent=1 // pred_check
      _
    $region11: #{tpu_custom_call.1} parent=1 // pred_check_branch
      %33 = sbr.rel (0) target = $region13
    $region12: #{tpu_custom_call.1} parent=1 // pred_region
      %34 = dma.done [#allocation3], 256
    $region13: #{tpu_custom_call.1} parent=1 // pred_fallthru
      _
    // Predicated region
    $region14: #{tpu_custom_call.1} parent=1 // pred_check
      _
    $region15: #{tpu_custom_call.1} parent=1 // pred_check_branch
      %36 = sbr.rel (0) target = $region17
    $region16: #{tpu_custom_call.1} parent=1 // pred_region
      %37 = dma.done [#allocation6], 16384
    $region17: #{tpu_custom_call.1} parent=1 // pred_fallthru
      _
    %v38 = vld [vmem:[#allocation2] sm:$0xff]
    %v39 = vld [vmem:[#allocation2 + $0x8] sm:$0xff]
    %v40 = vld [vmem:[#allocation5] sm:$0xff]
    %v41 = vld [vmem:[#allocation5 + $0x8] sm:$0xff]
    %v42 = vld [vmem:[#allocation5 + $0x10] sm:$0xff]
    %v43 = vld [vmem:[#allocation5 + $0x18] sm:$0xff]
    %v44 = vld [vmem:[#allocation5 + $0x20] sm:$0xff]
    %v45 = vld [vmem:[#allocation5 + $0x28] sm:$0xff]
    %v46 = vld [vmem:[#allocation5 + $0x30] sm:$0xff]
    %v47 = vld [vmem:[#allocation5 + $0x38] sm:$0xff]
    %v48 = vld [vmem:[#allocation5 + $0x40] sm:$0xff]
    %v49 = vld [vmem:[#allocation5 + $0x48] sm:$0xff]
    %v50 = vld [vmem:[#allocation5 + $0x50] sm:$0xff]
    %v51 = vld [vmem:[#allocation5 + $0x58] sm:$0xff]
    %v52 = vld [vmem:[#allocation5 + $0x60] sm:$0xff]
    %v53 = vld [vmem:[#allocation5 + $0x68] sm:$0xff]
    %v54 = vld [vmem:[#allocation5 + $0x70] sm:$0xff]
    %v55 = vld [vmem:[#allocation5 + $0x78] sm:$0xff]
    %v56 = vld [vmem:[#allocation5 + $0x80] sm:$0xff]
    %v57 = vld [vmem:[#allocation5 + $0x88] sm:$0xff]
    %v58 = vld [vmem:[#allocation5 + $0x90] sm:$0xff]
    %v59 = vld [vmem:[#allocation5 + $0x98] sm:$0xff]
    %v60 = vld [vmem:[#allocation5 + $0xa0] sm:$0xff]
    %v61 = vld [vmem:[#allocation5 + $0xa8] sm:$0xff]
    %v62 = vld [vmem:[#allocation5 + $0xb0] sm:$0xff]
    %v63 = vld [vmem:[#allocation5 + $0xb8] sm:$0xff]
    %v64 = vld [vmem:[#allocation5 + $0xc0] sm:$0xff]
    %v65 = vld [vmem:[#allocation5 + $0xc8] sm:$0xff]
    %v66 = vld [vmem:[#allocation5 + $0xd0] sm:$0xff]
    %v67 = vld [vmem:[#allocation5 + $0xd8] sm:$0xff]
    %v68 = vld [vmem:[#allocation5 + $0xe0] sm:$0xff]
    %v69 = vld [vmem:[#allocation5 + $0xe8] sm:$0xff]
    %v70 = vld [vmem:[#allocation5 + $0xf0] sm:$0xff]
    %v71 = vld [vmem:[#allocation5 + $0xf8] sm:$0xff]
    %v72 = vld [vmem:[#allocation5 + $0x100] sm:$0xff]
    %v73 = vld [vmem:[#allocation5 + $0x108] sm:$0xff]
    %v74 = vld [vmem:[#allocation5 + $0x110] sm:$0xff]
    %v75 = vld [vmem:[#allocation5 + $0x118] sm:$0xff]
    %v76 = vld [vmem:[#allocation5 + $0x120] sm:$0xff]
    %v77 = vld [vmem:[#allocation5 + $0x128] sm:$0xff]
    %v78 = vld [vmem:[#allocation5 + $0x130] sm:$0xff]
    %v79 = vld [vmem:[#allocation5 + $0x138] sm:$0xff]
    %v80 = vld [vmem:[#allocation5 + $0x140] sm:$0xff]
    %v81 = vld [vmem:[#allocation5 + $0x148] sm:$0xff]
    %v82 = vld [vmem:[#allocation5 + $0x150] sm:$0xff]
    %v83 = vld [vmem:[#allocation5 + $0x158] sm:$0xff]
    %v84 = vld [vmem:[#allocation5 + $0x160] sm:$0xff]
    %v85 = vld [vmem:[#allocation5 + $0x168] sm:$0xff]
    %v86 = vld [vmem:[#allocation5 + $0x170] sm:$0xff]
    %v87 = vld [vmem:[#allocation5 + $0x178] sm:$0xff]
    %v88 = vld [vmem:[#allocation5 + $0x180] sm:$0xff]
    %v89 = vld [vmem:[#allocation5 + $0x188] sm:$0xff]
    %v90 = vld [vmem:[#allocation5 + $0x190] sm:$0xff]
    %v91 = vld [vmem:[#allocation5 + $0x198] sm:$0xff]
    %v92 = vld [vmem:[#allocation5 + $0x1a0] sm:$0xff]
    %v93 = vld [vmem:[#allocation5 + $0x1a8] sm:$0xff]
    %v94 = vld [vmem:[#allocation5 + $0x1b0] sm:$0xff]
    %v95 = vld [vmem:[#allocation5 + $0x1b8] sm:$0xff]
    %v96 = vld [vmem:[#allocation5 + $0x1c0] sm:$0xff]
    %v97 = vld [vmem:[#allocation5 + $0x1c8] sm:$0xff]
    %v98 = vld [vmem:[#allocation5 + $0x1d0] sm:$0xff]
    %v99 = vld [vmem:[#allocation5 + $0x1d8] sm:$0xff]
    %v100 = vld [vmem:[#allocation5 + $0x1e0] sm:$0xff]
    %v101 = vld [vmem:[#allocation5 + $0x1e8] sm:$0xff]
    %v102 = vld [vmem:[#allocation5 + $0x1f0] sm:$0xff]
    %v103 = vld [vmem:[#allocation5 + $0x1f8] sm:$0xff]
    %v104 = vld [vmem:[#allocation5 + $0x200] sm:$0xff]
    %v105 = vld [vmem:[#allocation5 + $0x208] sm:$0xff]
    %v106 = vld [vmem:[#allocation5 + $0x210] sm:$0xff]
    %v107 = vld [vmem:[#allocation5 + $0x218] sm:$0xff]
    %v108 = vld [vmem:[#allocation5 + $0x220] sm:$0xff]
    %v109 = vld [vmem:[#allocation5 + $0x228] sm:$0xff]
    %v110 = vld [vmem:[#allocation5 + $0x230] sm:$0xff]
    %v111 = vld [vmem:[#allocation5 + $0x238] sm:$0xff]
    %v112 = vld [vmem:[#allocation5 + $0x240] sm:$0xff]
    %v113 = vld [vmem:[#allocation5 + $0x248] sm:$0xff]
    %v114 = vld [vmem:[#allocation5 + $0x250] sm:$0xff]
    %v115 = vld [vmem:[#allocation5 + $0x258] sm:$0xff]
    %v116 = vld [vmem:[#allocation5 + $0x260] sm:$0xff]
    %v117 = vld [vmem:[#allocation5 + $0x268] sm:$0xff]
    %v118 = vld [vmem:[#allocation5 + $0x270] sm:$0xff]
    %v119 = vld [vmem:[#allocation5 + $0x278] sm:$0xff]
    %v120 = vld [vmem:[#allocation5 + $0x280] sm:$0xff]
    %v121 = vld [vmem:[#allocation5 + $0x288] sm:$0xff]
    %v122 = vld [vmem:[#allocation5 + $0x290] sm:$0xff]
    %v123 = vld [vmem:[#allocation5 + $0x298] sm:$0xff]
    %v124 = vld [vmem:[#allocation5 + $0x2a0] sm:$0xff]
    %v125 = vld [vmem:[#allocation5 + $0x2a8] sm:$0xff]
    %v126 = vld [vmem:[#allocation5 + $0x2b0] sm:$0xff]
    %v127 = vld [vmem:[#allocation5 + $0x2b8] sm:$0xff]
    %v128 = vld [vmem:[#allocation5 + $0x2c0] sm:$0xff]
    %v129 = vld [vmem:[#allocation5 + $0x2c8] sm:$0xff]
    %v130 = vld [vmem:[#allocation5 + $0x2d0] sm:$0xff]
    %v131 = vld [vmem:[#allocation5 + $0x2d8] sm:$0xff]
    %v132 = vld [vmem:[#allocation5 + $0x2e0] sm:$0xff]
    %v133 = vld [vmem:[#allocation5 + $0x2e8] sm:$0xff]
    %v134 = vld [vmem:[#allocation5 + $0x2f0] sm:$0xff]
    %v135 = vld [vmem:[#allocation5 + $0x2f8] sm:$0xff]
    %v136 = vld [vmem:[#allocation5 + $0x300] sm:$0xff]
    %v137 = vld [vmem:[#allocation5 + $0x308] sm:$0xff]
    %v138 = vld [vmem:[#allocation5 + $0x310] sm:$0xff]
    %v139 = vld [vmem:[#allocation5 + $0x318] sm:$0xff]
    %v140 = vld [vmem:[#allocation5 + $0x320] sm:$0xff]
    %v141 = vld [vmem:[#allocation5 + $0x328] sm:$0xff]
    %v142 = vld [vmem:[#allocation5 + $0x330] sm:$0xff]
    %v143 = vld [vmem:[#allocation5 + $0x338] sm:$0xff]
    %v144 = vld [vmem:[#allocation5 + $0x340] sm:$0xff]
    %v145 = vld [vmem:[#allocation5 + $0x348] sm:$0xff]
    %v146 = vld [vmem:[#allocation5 + $0x350] sm:$0xff]
    %v147 = vld [vmem:[#allocation5 + $0x358] sm:$0xff]
    %v148 = vld [vmem:[#allocation5 + $0x360] sm:$0xff]
    %v149 = vld [vmem:[#allocation5 + $0x368] sm:$0xff]
    %v150 = vld [vmem:[#allocation5 + $0x370] sm:$0xff]
    %v151 = vld [vmem:[#allocation5 + $0x378] sm:$0xff]
    %v152 = vld [vmem:[#allocation5 + $0x380] sm:$0xff]
    %v153 = vld [vmem:[#allocation5 + $0x388] sm:$0xff]
    %v154 = vld [vmem:[#allocation5 + $0x390] sm:$0xff]
    %v155 = vld [vmem:[#allocation5 + $0x398] sm:$0xff]
    %v156 = vld [vmem:[#allocation5 + $0x3a0] sm:$0xff]
    %v157 = vld [vmem:[#allocation5 + $0x3a8] sm:$0xff]
    %v158 = vld [vmem:[#allocation5 + $0x3b0] sm:$0xff]
    %v159 = vld [vmem:[#allocation5 + $0x3b8] sm:$0xff]
    %v160 = vld [vmem:[#allocation5 + $0x3c0] sm:$0xff]
    %v161 = vld [vmem:[#allocation5 + $0x3c8] sm:$0xff]
    %v162 = vld [vmem:[#allocation5 + $0x3d0] sm:$0xff]
    %v163 = vld [vmem:[#allocation5 + $0x3d8] sm:$0xff]
    %v164 = vld [vmem:[#allocation5 + $0x3e0] sm:$0xff]
    %v165 = vld [vmem:[#allocation5 + $0x3e8] sm:$0xff]
    %v166 = vld [vmem:[#allocation5 + $0x3f0] sm:$0xff]
    %v167 = vld [vmem:[#allocation5 + $0x3f8] sm:$0xff]
    %v170 = vcombine.high %v38, %v38
    %v172 = vunpack.c.l.s4 1983009808
    %v173 = vunpack.c.0.s8 %v172
    %v174 = vlaneseq
    %v175 = vshrl.u32 %v174, 7
    %v176 = vsub.s32 %v173, %v175
    %v177 = vrot.slane %v38, %v176
    %v179 = vunpack.c.l.s4 1983009808
    %v180 = vunpack.c.0.s8 %v179
    %v181 = vlaneseq
    %v182 = vshrl.u32 %v181, 7
    %v183 = vsub.s32 %v180, %v182
    %v184 = vrot.slane %v170, %v183
    %v185 = vcombine.high %v177, %v177
    %v186 = vcombine.high %v184, %v184
    %v187 = vcombine.high %v39, %v39
    %v189 = vunpack.c.l.s4 1983009808
    %v190 = vunpack.c.0.s8 %v189
    %v191 = vlaneseq
    %v192 = vshrl.u32 %v191, 7
    %v193 = vsub.s32 %v190, %v192
    %v194 = vrot.slane %v39, %v193
    %v196 = vunpack.c.l.s4 1983009808
    %v197 = vunpack.c.0.s8 %v196
    %v198 = vlaneseq
    %v199 = vshrl.u32 %v198, 7
    %v200 = vsub.s32 %v197, %v199
    %v201 = vrot.slane %v187, %v200
    %v202 = vcombine.high %v194, %v194
    %v203 = vcombine.high %v201, %v201
    %212 = vmatprep.subr.mxu0 %v41
    %213 = vmatpush1.xpose.msra.mxu0 %v40
    %214 = vmatprep.subr.mxu0 %v49
    %215 = vmatpush1.xpose.msra.mxu0 %v48
    %216 = vmatprep.subr.mxu0 %v57
    %217 = vmatpush1.xpose.msra.mxu0 %v56
    %218 = vmatprep.subr.mxu0 %v65
    %219 = vmatpush1.xpose.msra.mxu0 %v64
    %220 = vmatprep.subr.mxu0 %v73
    %221 = vmatpush1.xpose.msra.mxu0 %v72
    %222 = vmatprep.subr.mxu0 %v81
    %223 = vmatpush1.xpose.msra.mxu0 %v80
    %224 = vmatprep.subr.mxu0 %v89
    %225 = vmatpush1.xpose.msra.mxu0 %v88
    %226 = vmatprep.subr.mxu0 %v97
    %227 = vmatpush1.xpose.msra.mxu0 %v96
    %228 = vmatprep.subr.mxu0 %v105
    %229 = vmatpush1.xpose.msra.mxu0 %v104
    %230 = vmatprep.subr.mxu0 %v113
    %231 = vmatpush1.xpose.msra.mxu0 %v112
    %232 = vmatprep.subr.mxu0 %v121
    %233 = vmatpush1.xpose.msra.mxu0 %v120
    %234 = vmatprep.subr.mxu0 %v129
    %235 = vmatpush1.xpose.msra.mxu0 %v128
    %236 = vmatprep.subr.mxu0 %v137
    %237 = vmatpush1.xpose.msra.mxu0 %v136
    %238 = vmatprep.subr.mxu0 %v145
    %239 = vmatpush1.xpose.msra.mxu0 %v144
    %240 = vmatprep.subr.mxu0 %v153
    %241 = vmatpush1.xpose.msra.mxu0 %v152
    %242 = vmatprep.subr.mxu0 %v161
    %243 = vmatpush1.xpose.msra.mxu0 %v160
    %244 = vmatprep.subr.mxu0 0.0
    %245 = vmatpush1.xpose.msra.mxu0 0.0
    %246 = vmatprep.subr.mxu0 0.0
    %247 = vmatpush1.xpose.msra.mxu0 0.0
    %248 = vmatprep.subr.mxu0 0.0
    %249 = vmatpush1.xpose.msra.mxu0 0.0
    %250 = vmatprep.subr.mxu0 0.0
    %251 = vmatpush1.xpose.msra.mxu0 0.0
    %252 = vmatprep.subr.mxu0 0.0
    %253 = vmatpush1.xpose.msra.mxu0 0.0
    %254 = vmatprep.subr.mxu0 0.0
    %255 = vmatpush1.xpose.msra.mxu0 0.0
    %256 = vmatprep.subr.mxu0 0.0
    %257 = vmatpush1.xpose.msra.mxu0 0.0
    %258 = vmatprep.subr.mxu0 0.0
    %259 = vmatpush1.xpose.msra.mxu0 0.0
    %260 = vmatprep.subr.mxu0 0.0
    %261 = vmatpush1.xpose.msra.mxu0 0.0
    %262 = vmatprep.subr.mxu0 0.0
    %263 = vmatpush1.xpose.msra.mxu0 0.0
    %264 = vmatprep.subr.mxu0 0.0
    %265 = vmatpush1.xpose.msra.mxu0 0.0
    %266 = vmatprep.subr.mxu0 0.0
    %267 = vmatpush1.xpose.msra.mxu0 0.0
    %268 = vmatprep.subr.mxu0 0.0
    %269 = vmatpush1.xpose.msra.mxu0 0.0
    %270 = vmatprep.subr.mxu0 0.0
    %271 = vmatpush1.xpose.msra.mxu0 0.0
    %272 = vmatprep.subr.mxu0 0.0
    %273 = vmatpush1.xpose.msra.mxu0 0.0
    %274 = vmatprep.subr.mxu0 0.0
    %275 = vmatpush1.xpose.msra.mxu0 0.0
    %276 = vmatprep.mubr.f32.mxu0 %v185
    %277 = vmatmul.mubr.f32.gmra.mrb[0].mxu0 %v177
    %v278 = vpop.f32.mrb[0].mxu0
    %v279 = vadd.f32 0.0, %v278
    %v280 = vpop.f32.mrb[0].mxu0
    %281 = vdwg.mxu0
    %282 = vmatprep.subr.mxu0 %v43
    %283 = vmatpush1.xpose.msra.mxu0 %v42
    %284 = vmatprep.subr.mxu0 %v51
    %285 = vmatpush1.xpose.msra.mxu0 %v50
    %286 = vmatprep.subr.mxu0 %v59
    %287 = vmatpush1.xpose.msra.mxu0 %v58
    %288 = vmatprep.subr.mxu0 %v67
    %289 = vmatpush1.xpose.msra.mxu0 %v66
    %290 = vmatprep.subr.mxu0 %v75
    %291 = vmatpush1.xpose.msra.mxu0 %v74
    %292 = vmatprep.subr.mxu0 %v83
    %293 = vmatpush1.xpose.msra.mxu0 %v82
    %294 = vmatprep.subr.mxu0 %v91
    %295 = vmatpush1.xpose.msra.mxu0 %v90
    %296 = vmatprep.subr.mxu0 %v99
    %297 = vmatpush1.xpose.msra.mxu0 %v98
    %298 = vmatprep.subr.mxu0 %v107
    %299 = vmatpush1.xpose.msra.mxu0 %v106
    %300 = vmatprep.subr.mxu0 %v115
    %301 = vmatpush1.xpose.msra.mxu0 %v114
    %302 = vmatprep.subr.mxu0 %v123
    %303 = vmatpush1.xpose.msra.mxu0 %v122
    %304 = vmatprep.subr.mxu0 %v131
    %305 = vmatpush1.xpose.msra.mxu0 %v130
    %306 = vmatprep.subr.mxu0 %v139
    %307 = vmatpush1.xpose.msra.mxu0 %v138
    %308 = vmatprep.subr.mxu0 %v147
    %309 = vmatpush1.xpose.msra.mxu0 %v146
    %310 = vmatprep.subr.mxu0 %v155
    %311 = vmatpush1.xpose.msra.mxu0 %v154
    %312 = vmatprep.subr.mxu0 %v163
    %313 = vmatpush1.xpose.msra.mxu0 %v162
    %314 = vmatprep.subr.mxu0 0.0
    %315 = vmatpush1.xpose.msra.mxu0 0.0
    %316 = vmatprep.subr.mxu0 0.0
    %317 = vmatpush1.xpose.msra.mxu0 0.0
    %318 = vmatprep.subr.mxu0 0.0
    %319 = vmatpush1.xpose.msra.mxu0 0.0
    %320 = vmatprep.subr.mxu0 0.0
    %321 = vmatpush1.xpose.msra.mxu0 0.0
    %322 = vmatprep.subr.mxu0 0.0
    %323 = vmatpush1.xpose.msra.mxu0 0.0
    %324 = vmatprep.subr.mxu0 0.0
    %325 = vmatpush1.xpose.msra.mxu0 0.0
    %326 = vmatprep.subr.mxu0 0.0
    %327 = vmatpush1.xpose.msra.mxu0 0.0
    %328 = vmatprep.subr.mxu0 0.0
    %329 = vmatpush1.xpose.msra.mxu0 0.0
    %330 = vmatprep.subr.mxu0 0.0
    %331 = vmatpush1.xpose.msra.mxu0 0.0
    %332 = vmatprep.subr.mxu0 0.0
    %333 = vmatpush1.xpose.msra.mxu0 0.0
    %334 = vmatprep.subr.mxu0 0.0
    %335 = vmatpush1.xpose.msra.mxu0 0.0
    %336 = vmatprep.subr.mxu0 0.0
    %337 = vmatpush1.xpose.msra.mxu0 0.0
    %338 = vmatprep.subr.mxu0 0.0
    %339 = vmatpush1.xpose.msra.mxu0 0.0
    %340 = vmatprep.subr.mxu0 0.0
    %341 = vmatpush1.xpose.msra.mxu0 0.0
    %342 = vmatprep.subr.mxu0 0.0
    %343 = vmatpush1.xpose.msra.mxu0 0.0
    %344 = vmatprep.subr.mxu0 0.0
    %345 = vmatpush1.xpose.msra.mxu0 0.0
    %346 = vmatprep.mubr.f32.mxu0 %v186
    %347 = vmatmul.mubr.f32.gmra.mrb[0].mxu0 %v184
    %v348 = vpop.f32.mrb[0].mxu0
    %v349 = vadd.f32 %v279, %v348
    %v350 = vpop.f32.mrb[0].mxu0
    %351 = vdwg.mxu0
    %352 = vmatprep.subr.mxu0 %v45
    %353 = vmatpush1.xpose.msra.mxu0 %v44
    %354 = vmatprep.subr.mxu0 %v53
    %355 = vmatpush1.xpose.msra.mxu0 %v52
    %356 = vmatprep.subr.mxu0 %v61
    %357 = vmatpush1.xpose.msra.mxu0 %v60
    %358 = vmatprep.subr.mxu0 %v69
    %359 = vmatpush1.xpose.msra.mxu0 %v68
    %360 = vmatprep.subr.mxu0 %v77
    %361 = vmatpush1.xpose.msra.mxu0 %v76
    %362 = vmatprep.subr.mxu0 %v85
    %363 = vmatpush1.xpose.msra.mxu0 %v84
    %364 = vmatprep.subr.mxu0 %v93
    %365 = vmatpush1.xpose.msra.mxu0 %v92
    %366 = vmatprep.subr.mxu0 %v101
    %367 = vmatpush1.xpose.msra.mxu0 %v100
    %368 = vmatprep.subr.mxu0 %v109
    %369 = vmatpush1.xpose.msra.mxu0 %v108
    %370 = vmatprep.subr.mxu0 %v117
    %371 = vmatpush1.xpose.msra.mxu0 %v116
    %372 = vmatprep.subr.mxu0 %v125
    %373 = vmatpush1.xpose.msra.mxu0 %v124
    %374 = vmatprep.subr.mxu0 %v133
    %375 = vmatpush1.xpose.msra.mxu0 %v132
    %376 = vmatprep.subr.mxu0 %v141
    %377 = vmatpush1.xpose.msra.mxu0 %v140
    %378 = vmatprep.subr.mxu0 %v149
    %379 = vmatpush1.xpose.msra.mxu0 %v148
    %380 = vmatprep.subr.mxu0 %v157
    %381 = vmatpush1.xpose.msra.mxu0 %v156
    %382 = vmatprep.subr.mxu0 %v165
    %383 = vmatpush1.xpose.msra.mxu0 %v164
    %384 = vmatprep.subr.mxu0 0.0
    %385 = vmatpush1.xpose.msra.mxu0 0.0
    %386 = vmatprep.subr.mxu0 0.0
    %387 = vmatpush1.xpose.msra.mxu0 0.0
    %388 = vmatprep.subr.mxu0 0.0
    %389 = vmatpush1.xpose.msra.mxu0 0.0
    %390 = vmatprep.subr.mxu0 0.0
    %391 = vmatpush1.xpose.msra.mxu0 0.0
    %392 = vmatprep.subr.mxu0 0.0
    %393 = vmatpush1.xpose.msra.mxu0 0.0
    %394 = vmatprep.subr.mxu0 0.0
    %395 = vmatpush1.xpose.msra.mxu0 0.0
    %396 = vmatprep.subr.mxu0 0.0
    %397 = vmatpush1.xpose.msra.mxu0 0.0
    %398 = vmatprep.subr.mxu0 0.0
    %399 = vmatpush1.xpose.msra.mxu0 0.0
    %400 = vmatprep.subr.mxu0 0.0
    %401 = vmatpush1.xpose.msra.mxu0 0.0
    %402 = vmatprep.subr.mxu0 0.0
    %403 = vmatpush1.xpose.msra.mxu0 0.0
    %404 = vmatprep.subr.mxu0 0.0
    %405 = vmatpush1.xpose.msra.mxu0 0.0
    %406 = vmatprep.subr.mxu0 0.0
    %407 = vmatpush1.xpose.msra.mxu0 0.0
    %408 = vmatprep.subr.mxu0 0.0
    %409 = vmatpush1.xpose.msra.mxu0 0.0
    %410 = vmatprep.subr.mxu0 0.0
    %411 = vmatpush1.xpose.msra.mxu0 0.0
    %412 = vmatprep.subr.mxu0 0.0
    %413 = vmatpush1.xpose.msra.mxu0 0.0
    %414 = vmatprep.subr.mxu0 0.0
    %415 = vmatpush1.xpose.msra.mxu0 0.0
    %416 = vmatprep.mubr.f32.mxu0 %v202
    %417 = vmatmul.mubr.f32.gmra.mrb[0].mxu0 %v194
    %v418 = vpop.f32.mrb[0].mxu0
    %v419 = vadd.f32 %v349, %v418
    %v420 = vpop.f32.mrb[0].mxu0
    %421 = vdwg.mxu0
    %422 = vmatprep.subr.mxu0 %v47
    %423 = vmatpush1.xpose.msra.mxu0 %v46
    %424 = vmatprep.subr.mxu0 %v55
    %425 = vmatpush1.xpose.msra.mxu0 %v54
    %426 = vmatprep.subr.mxu0 %v63
    %427 = vmatpush1.xpose.msra.mxu0 %v62
    %428 = vmatprep.subr.mxu0 %v71
    %429 = vmatpush1.xpose.msra.mxu0 %v70
    %430 = vmatprep.subr.mxu0 %v79
    %431 = vmatpush1.xpose.msra.mxu0 %v78
    %432 = vmatprep.subr.mxu0 %v87
    %433 = vmatpush1.xpose.msra.mxu0 %v86
    %434 = vmatprep.subr.mxu0 %v95
    %435 = vmatpush1.xpose.msra.mxu0 %v94
    %436 = vmatprep.subr.mxu0 %v103
    %437 = vmatpush1.xpose.msra.mxu0 %v102
    %438 = vmatprep.subr.mxu0 %v111
    %439 = vmatpush1.xpose.msra.mxu0 %v110
    %440 = vmatprep.subr.mxu0 %v119
    %441 = vmatpush1.xpose.msra.mxu0 %v118
    %442 = vmatprep.subr.mxu0 %v127
    %443 = vmatpush1.xpose.msra.mxu0 %v126
    %444 = vmatprep.subr.mxu0 %v135
    %445 = vmatpush1.xpose.msra.mxu0 %v134
    %446 = vmatprep.subr.mxu0 %v143
    %447 = vmatpush1.xpose.msra.mxu0 %v142
    %448 = vmatprep.subr.mxu0 %v151
    %449 = vmatpush1.xpose.msra.mxu0 %v150
    %450 = vmatprep.subr.mxu0 %v159
    %451 = vmatpush1.xpose.msra.mxu0 %v158
    %452 = vmatprep.subr.mxu0 %v167
    %453 = vmatpush1.xpose.msra.mxu0 %v166
    %454 = vmatprep.subr.mxu0 0.0
    %455 = vmatpush1.xpose.msra.mxu0 0.0
    %456 = vmatprep.subr.mxu0 0.0
    %457 = vmatpush1.xpose.msra.mxu0 0.0
    %458 = vmatprep.subr.mxu0 0.0
    %459 = vmatpush1.xpose.msra.mxu0 0.0
    %460 = vmatprep.subr.mxu0 0.0
    %461 = vmatpush1.xpose.msra.mxu0 0.0
    %462 = vmatprep.subr.mxu0 0.0
    %463 = vmatpush1.xpose.msra.mxu0 0.0
    %464 = vmatprep.subr.mxu0 0.0
    %465 = vmatpush1.xpose.msra.mxu0 0.0
    %466 = vmatprep.subr.mxu0 0.0
    %467 = vmatpush1.xpose.msra.mxu0 0.0
    %468 = vmatprep.subr.mxu0 0.0
    %469 = vmatpush1.xpose.msra.mxu0 0.0
    %470 = vmatprep.subr.mxu0 0.0
    %471 = vmatpush1.xpose.msra.mxu0 0.0
    %472 = vmatprep.subr.mxu0 0.0
    %473 = vmatpush1.xpose.msra.mxu0 0.0
    %474 = vmatprep.subr.mxu0 0.0
    %475 = vmatpush1.xpose.msra.mxu0 0.0
    %476 = vmatprep.subr.mxu0 0.0
    %477 = vmatpush1.xpose.msra.mxu0 0.0
    %478 = vmatprep.subr.mxu0 0.0
    %479 = vmatpush1.xpose.msra.mxu0 0.0
    %480 = vmatprep.subr.mxu0 0.0
    %481 = vmatpush1.xpose.msra.mxu0 0.0
    %482 = vmatprep.subr.mxu0 0.0
    %483 = vmatpush1.xpose.msra.mxu0 0.0
    %484 = vmatprep.subr.mxu0 0.0
    %485 = vmatpush1.xpose.msra.mxu0 0.0
    %486 = vmatprep.mubr.f32.mxu0 %v203
    %487 = vmatmul.mubr.f32.gmra.mrb[0].mxu0 %v201
    %v488 = vpop.f32.mrb[0].mxu0
    %v489 = vadd.f32 %v419, %v488
    %v490 = vpop.f32.mrb[0].mxu0
    %491 = vdwg.mxu0
    %v492 = vmul.f32 %v38, %v38
    %v493 = vmul.f32 %v39, %v39
    %v496 = vcombine.high %v492, %v492
    %v498 = vunpack.c.l.s4 1983009808
    %v499 = vunpack.c.0.s8 %v498
    %v500 = vlaneseq
    %v501 = vshrl.u32 %v500, 7
    %v502 = vsub.s32 %v499, %v501
    %v503 = vrot.slane %v492, %v502
    %v505 = vunpack.c.l.s4 1983009808
    %v506 = vunpack.c.0.s8 %v505
    %v507 = vlaneseq
    %v508 = vshrl.u32 %v507, 7
    %v509 = vsub.s32 %v506, %v508
    %v510 = vrot.slane %v496, %v509
    %v511 = vcombine.high %v503, %v503
    %v512 = vcombine.high %v510, %v510
    %v513 = vcombine.high %v493, %v493
    %v515 = vunpack.c.l.s4 1983009808
    %v516 = vunpack.c.0.s8 %v515
    %v517 = vlaneseq
    %v518 = vshrl.u32 %v517, 7
    %v519 = vsub.s32 %v516, %v518
    %v520 = vrot.slane %v493, %v519
    %v522 = vunpack.c.l.s4 1983009808
    %v523 = vunpack.c.0.s8 %v522
    %v524 = vlaneseq
    %v525 = vshrl.u32 %v524, 7
    %v526 = vsub.s32 %v523, %v525
    %v527 = vrot.slane %v513, %v526
    %v528 = vcombine.high %v520, %v520
    %v529 = vcombine.high %v527, %v527
    %vm538 = vcmask 1041408
    %v539 = vsel %vm538, %v503, 0.0
    %v540 = vsel %vm538, %v511, 0.0
    %v541 = vadd.f32 %v539, %v540
    %v542 = vsel %vm538, %v510, 0.0
    %v543 = vadd.f32 %v541, %v542
    %v544 = vsel %vm538, %v512, 0.0
    %v545 = vadd.f32 %v543, %v544
    %v546 = vsel %vm538, %v520, 0.0
    %v547 = vadd.f32 %v545, %v546
    %v548 = vsel %vm538, %v528, 0.0
    %v549 = vadd.f32 %v547, %v548
    %v550 = vsel %vm538, %v527, 0.0
    %v551 = vadd.f32 %v549, %v550
    %v552 = vsel %vm538, %v529, 0.0
    %v553 = vadd.f32 %v551, %v552
    %554 = vadd.xlane.f32.xlu0 %v553
    %v555 = vpop.xlane.xlu0 %554
    %v556 = vrsqrt.pop %v555
    %v557 = vmul.f32 %v489, %v556
    %558 = vmatprep.subr.mxu0 %v41
    %559 = vmatpush1.msra.mxu0 %v40
    %560 = vmatprep.subr.mxu0 %v49
    %561 = vmatpush1.msra.mxu0 %v48
    %562 = vmatprep.subr.mxu0 %v57
    %563 = vmatpush1.msra.mxu0 %v56
    %564 = vmatprep.subr.mxu0 %v65
    %565 = vmatpush1.msra.mxu0 %v64
    %566 = vmatprep.subr.mxu0 %v73
    %567 = vmatpush1.msra.mxu0 %v72
    %568 = vmatprep.subr.mxu0 %v81
    %569 = vmatpush1.msra.mxu0 %v80
    %570 = vmatprep.subr.mxu0 %v89
    %571 = vmatpush1.msra.mxu0 %v88
    %572 = vmatprep.subr.mxu0 %v97
    %573 = vmatpush1.msra.mxu0 %v96
    %574 = vmatprep.subr.mxu0 %v105
    %575 = vmatpush1.msra.mxu0 %v104
    %576 = vmatprep.subr.mxu0 %v113
    %577 = vmatpush1.msra.mxu0 %v112
    %578 = vmatprep.subr.mxu0 %v121
    %579 = vmatpush1.msra.mxu0 %v120
    %580 = vmatprep.subr.mxu0 %v129
    %581 = vmatpush1.msra.mxu0 %v128
    %582 = vmatprep.subr.mxu0 %v137
    %583 = vmatpush1.msra.mxu0 %v136
    %584 = vmatprep.subr.mxu0 %v145
    %585 = vmatpush1.msra.mxu0 %v144
    %586 = vmatprep.subr.mxu0 %v153
    %587 = vmatpush1.msra.mxu0 %v152
    %588 = vmatprep.subr.mxu0 %v161
    %589 = vmatpush1.msra.mxu0 %v160
    %590 = vmatprep.subr.mxu0 0.0
    %591 = vmatpush1.msra.mxu0 0.0
    %592 = vmatprep.subr.mxu0 0.0
    %593 = vmatpush1.msra.mxu0 0.0
    %594 = vmatprep.subr.mxu0 0.0
    %595 = vmatpush1.msra.mxu0 0.0
    %596 = vmatprep.subr.mxu0 0.0
    %597 = vmatpush1.msra.mxu0 0.0
    %598 = vmatprep.subr.mxu0 0.0
    %599 = vmatpush1.msra.mxu0 0.0
    %600 = vmatprep.subr.mxu0 0.0
    %601 = vmatpush1.msra.mxu0 0.0
    %602 = vmatprep.subr.mxu0 0.0
    %603 = vmatpush1.msra.mxu0 0.0
    %604 = vmatprep.subr.mxu0 0.0
    %605 = vmatpush1.msra.mxu0 0.0
    %606 = vmatprep.subr.mxu0 0.0
    %607 = vmatpush1.msra.mxu0 0.0
    %608 = vmatprep.subr.mxu0 0.0
    %609 = vmatpush1.msra.mxu0 0.0
    %610 = vmatprep.subr.mxu0 0.0
    %611 = vmatpush1.msra.mxu0 0.0
    %612 = vmatprep.subr.mxu0 0.0
    %613 = vmatpush1.msra.mxu0 0.0
    %614 = vmatprep.subr.mxu0 0.0
    %615 = vmatpush1.msra.mxu0 0.0
    %616 = vmatprep.subr.mxu0 0.0
    %617 = vmatpush1.msra.mxu0 0.0
    %618 = vmatprep.subr.mxu0 0.0
    %619 = vmatpush1.msra.mxu0 0.0
    %620 = vmatprep.subr.mxu0 0.0
    %621 = vmatpush1.msra.mxu0 0.0
    %622 = vmatprep.mubr.f32.mxu0 0.0
    %623 = vmatmul.mubr.f32.gmra.mrb[0].mxu0 %v557
    %v624 = vpop.f32.mrb[0].mxu0
    %v625 = vadd.f32 0.0, %v624
    %v626 = vpop.f32.mrb[0].mxu0
    %v627 = vadd.f32 0.0, %v626
    %628 = vdwg.mxu0
    %629 = vmatprep.subr.mxu0 %v43
    %630 = vmatpush1.msra.mxu0 %v42
    %631 = vmatprep.subr.mxu0 %v51
    %632 = vmatpush1.msra.mxu0 %v50
    %633 = vmatprep.subr.mxu0 %v59
    %634 = vmatpush1.msra.mxu0 %v58
    %635 = vmatprep.subr.mxu0 %v67
    %636 = vmatpush1.msra.mxu0 %v66
    %637 = vmatprep.subr.mxu0 %v75
    %638 = vmatpush1.msra.mxu0 %v74
    %639 = vmatprep.subr.mxu0 %v83
    %640 = vmatpush1.msra.mxu0 %v82
    %641 = vmatprep.subr.mxu0 %v91
    %642 = vmatpush1.msra.mxu0 %v90
    %643 = vmatprep.subr.mxu0 %v99
    %644 = vmatpush1.msra.mxu0 %v98
    %645 = vmatprep.subr.mxu0 %v107
    %646 = vmatpush1.msra.mxu0 %v106
    %647 = vmatprep.subr.mxu0 %v115
    %648 = vmatpush1.msra.mxu0 %v114
    %649 = vmatprep.subr.mxu0 %v123
    %650 = vmatpush1.msra.mxu0 %v122
    %651 = vmatprep.subr.mxu0 %v131
    %652 = vmatpush1.msra.mxu0 %v130
    %653 = vmatprep.subr.mxu0 %v139
    %654 = vmatpush1.msra.mxu0 %v138
    %655 = vmatprep.subr.mxu0 %v147
    %656 = vmatpush1.msra.mxu0 %v146
    %657 = vmatprep.subr.mxu0 %v155
    %658 = vmatpush1.msra.mxu0 %v154
    %659 = vmatprep.subr.mxu0 %v163
    %660 = vmatpush1.msra.mxu0 %v162
    %661 = vmatprep.subr.mxu0 0.0
    %662 = vmatpush1.msra.mxu0 0.0
    %663 = vmatprep.subr.mxu0 0.0
    %664 = vmatpush1.msra.mxu0 0.0
    %665 = vmatprep.subr.mxu0 0.0
    %666 = vmatpush1.msra.mxu0 0.0
    %667 = vmatprep.subr.mxu0 0.0
    %668 = vmatpush1.msra.mxu0 0.0
    %669 = vmatprep.subr.mxu0 0.0
    %670 = vmatpush1.msra.mxu0 0.0
    %671 = vmatprep.subr.mxu0 0.0
    %672 = vmatpush1.msra.mxu0 0.0
    %673 = vmatprep.subr.mxu0 0.0
    %674 = vmatpush1.msra.mxu0 0.0
    %675 = vmatprep.subr.mxu0 0.0
    %676 = vmatpush1.msra.mxu0 0.0
    %677 = vmatprep.subr.mxu0 0.0
    %678 = vmatpush1.msra.mxu0 0.0
    %679 = vmatprep.subr.mxu0 0.0
    %680 = vmatpush1.msra.mxu0 0.0
    %681 = vmatprep.subr.mxu0 0.0
    %682 = vmatpush1.msra.mxu0 0.0
    %683 = vmatprep.subr.mxu0 0.0
    %684 = vmatpush1.msra.mxu0 0.0
    %685 = vmatprep.subr.mxu0 0.0
    %686 = vmatpush1.msra.mxu0 0.0
    %687 = vmatprep.subr.mxu0 0.0
    %688 = vmatpush1.msra.mxu0 0.0
    %689 = vmatprep.subr.mxu0 0.0
    %690 = vmatpush1.msra.mxu0 0.0
    %691 = vmatprep.subr.mxu0 0.0
    %692 = vmatpush1.msra.mxu0 0.0
    %693 = vmatprep.mubr.f32.mxu0 0.0
    %694 = vmatmul.mubr.f32.gmra.mrb[0].mxu0 %v557
    %v695 = vpop.f32.mrb[0].mxu0
    %v696 = vadd.f32 0.0, %v695
    %v697 = vpop.f32.mrb[0].mxu0
    %v698 = vadd.f32 0.0, %v697
    %699 = vdwg.mxu0
    %700 = vmatprep.subr.mxu0 %v45
    %701 = vmatpush1.msra.mxu0 %v44
    %702 = vmatprep.subr.mxu0 %v53
    %703 = vmatpush1.msra.mxu0 %v52
    %704 = vmatprep.subr.mxu0 %v61
    %705 = vmatpush1.msra.mxu0 %v60
    %706 = vmatprep.subr.mxu0 %v69
    %707 = vmatpush1.msra.mxu0 %v68
    %708 = vmatprep.subr.mxu0 %v77
    %709 = vmatpush1.msra.mxu0 %v76
    %710 = vmatprep.subr.mxu0 %v85
    %711 = vmatpush1.msra.mxu0 %v84
    %712 = vmatprep.subr.mxu0 %v93
    %713 = vmatpush1.msra.mxu0 %v92
    %714 = vmatprep.subr.mxu0 %v101
    %715 = vmatpush1.msra.mxu0 %v100
    %716 = vmatprep.subr.mxu0 %v109
    %717 = vmatpush1.msra.mxu0 %v108
    %718 = vmatprep.subr.mxu0 %v117
    %719 = vmatpush1.msra.mxu0 %v116
    %720 = vmatprep.subr.mxu0 %v125
    %721 = vmatpush1.msra.mxu0 %v124
    %722 = vmatprep.subr.mxu0 %v133
    %723 = vmatpush1.msra.mxu0 %v132
    %724 = vmatprep.subr.mxu0 %v141
    %725 = vmatpush1.msra.mxu0 %v140
    %726 = vmatprep.subr.mxu0 %v149
    %727 = vmatpush1.msra.mxu0 %v148
    %728 = vmatprep.subr.mxu0 %v157
    %729 = vmatpush1.msra.mxu0 %v156
    %730 = vmatprep.subr.mxu0 %v165
    %731 = vmatpush1.msra.mxu0 %v164
    %732 = vmatprep.subr.mxu0 0.0
    %733 = vmatpush1.msra.mxu0 0.0
    %734 = vmatprep.subr.mxu0 0.0
    %735 = vmatpush1.msra.mxu0 0.0
    %736 = vmatprep.subr.mxu0 0.0
    %737 = vmatpush1.msra.mxu0 0.0
    %738 = vmatprep.subr.mxu0 0.0
    %739 = vmatpush1.msra.mxu0 0.0
    %740 = vmatprep.subr.mxu0 0.0
    %741 = vmatpush1.msra.mxu0 0.0
    %742 = vmatprep.subr.mxu0 0.0
    %743 = vmatpush1.msra.mxu0 0.0
    %744 = vmatprep.subr.mxu0 0.0
    %745 = vmatpush1.msra.mxu0 0.0
    %746 = vmatprep.subr.mxu0 0.0
    %747 = vmatpush1.msra.mxu0 0.0
    %748 = vmatprep.subr.mxu0 0.0
    %749 = vmatpush1.msra.mxu0 0.0
    %750 = vmatprep.subr.mxu0 0.0
    %751 = vmatpush1.msra.mxu0 0.0
    %752 = vmatprep.subr.mxu0 0.0
    %753 = vmatpush1.msra.mxu0 0.0
    %754 = vmatprep.subr.mxu0 0.0
    %755 = vmatpush1.msra.mxu0 0.0
    %756 = vmatprep.subr.mxu0 0.0
    %757 = vmatpush1.msra.mxu0 0.0
    %758 = vmatprep.subr.mxu0 0.0
    %759 = vmatpush1.msra.mxu0 0.0
    %760 = vmatprep.subr.mxu0 0.0
    %761 = vmatpush1.msra.mxu0 0.0
    %762 = vmatprep.subr.mxu0 0.0
    %763 = vmatpush1.msra.mxu0 0.0
    %764 = vmatprep.mubr.f32.mxu0 0.0
    %765 = vmatmul.mubr.f32.gmra.mrb[0].mxu0 %v557
    %v766 = vpop.f32.mrb[0].mxu0
    %v767 = vadd.f32 0.0, %v766
    %v768 = vpop.f32.mrb[0].mxu0
    %v769 = vadd.f32 0.0, %v768
    %770 = vdwg.mxu0
    %771 = vmatprep.subr.mxu0 %v47
    %772 = vmatpush1.msra.mxu0 %v46
    %773 = vmatprep.subr.mxu0 %v55
    %774 = vmatpush1.msra.mxu0 %v54
    %775 = vmatprep.subr.mxu0 %v63
    %776 = vmatpush1.msra.mxu0 %v62
    %777 = vmatprep.subr.mxu0 %v71
    %778 = vmatpush1.msra.mxu0 %v70
    %779 = vmatprep.subr.mxu0 %v79
    %780 = vmatpush1.msra.mxu0 %v78
    %781 = vmatprep.subr.mxu0 %v87
    %782 = vmatpush1.msra.mxu0 %v86
    %783 = vmatprep.subr.mxu0 %v95
    %784 = vmatpush1.msra.mxu0 %v94
    %785 = vmatprep.subr.mxu0 %v103
    %786 = vmatpush1.msra.mxu0 %v102
    %787 = vmatprep.subr.mxu0 %v111
    %788 = vmatpush1.msra.mxu0 %v110
    %789 = vmatprep.subr.mxu0 %v119
    %790 = vmatpush1.msra.mxu0 %v118
    %791 = vmatprep.subr.mxu0 %v127
    %792 = vmatpush1.msra.mxu0 %v126
    %793 = vmatprep.subr.mxu0 %v135
    %794 = vmatpush1.msra.mxu0 %v134
    %795 = vmatprep.subr.mxu0 %v143
    %796 = vmatpush1.msra.mxu0 %v142
    %797 = vmatprep.subr.mxu0 %v151
    %798 = vmatpush1.msra.mxu0 %v150
    %799 = vmatprep.subr.mxu0 %v159
    %800 = vmatpush1.msra.mxu0 %v158
    %801 = vmatprep.subr.mxu0 %v167
    %802 = vmatpush1.msra.mxu0 %v166
    %803 = vmatprep.subr.mxu0 0.0
    %804 = vmatpush1.msra.mxu0 0.0
    %805 = vmatprep.subr.mxu0 0.0
    %806 = vmatpush1.msra.mxu0 0.0
    %807 = vmatprep.subr.mxu0 0.0
    %808 = vmatpush1.msra.mxu0 0.0
    %809 = vmatprep.subr.mxu0 0.0
    %810 = vmatpush1.msra.mxu0 0.0
    %811 = vmatprep.subr.mxu0 0.0
    %812 = vmatpush1.msra.mxu0 0.0
    %813 = vmatprep.subr.mxu0 0.0
    %814 = vmatpush1.msra.mxu0 0.0
    %815 = vmatprep.subr.mxu0 0.0
    %816 = vmatpush1.msra.mxu0 0.0
    %817 = vmatprep.subr.mxu0 0.0
    %818 = vmatpush1.msra.mxu0 0.0
    %819 = vmatprep.subr.mxu0 0.0
    %820 = vmatpush1.msra.mxu0 0.0
    %821 = vmatprep.subr.mxu0 0.0
    %822 = vmatpush1.msra.mxu0 0.0
    %823 = vmatprep.subr.mxu0 0.0
    %824 = vmatpush1.msra.mxu0 0.0
    %825 = vmatprep.subr.mxu0 0.0
    %826 = vmatpush1.msra.mxu0 0.0
    %827 = vmatprep.subr.mxu0 0.0
    %828 = vmatpush1.msra.mxu0 0.0
    %829 = vmatprep.subr.mxu0 0.0
    %830 = vmatpush1.msra.mxu0 0.0
    %831 = vmatprep.subr.mxu0 0.0
    %832 = vmatpush1.msra.mxu0 0.0
    %833 = vmatprep.subr.mxu0 0.0
    %834 = vmatpush1.msra.mxu0 0.0
    %835 = vmatprep.mubr.f32.mxu0 0.0
    %836 = vmatmul.mubr.f32.gmra.mrb[0].mxu0 %v557
    %v837 = vpop.f32.mrb[0].mxu0
    %v838 = vadd.f32 0.0, %v837
    %v839 = vpop.f32.mrb[0].mxu0
    %v840 = vadd.f32 0.0, %v839
    %841 = vdwg.mxu0
    %v850 = vcombine.low %v625, %v627
    %v851 = vcombine.low %v696, %v698
    %v853 = vunpack.c.l.s4 1983009808
    %v854 = vunpack.c.0.s8 %v853
    %v855 = vlaneseq
    %v856 = vshrl.u32 %v855, 7
    %v857 = vsub.s32 %v854, %v856
    %v858 = vrot.slane %v850, %v857
    %v860 = vunpack.c.l.s4 1983009808
    %v861 = vunpack.c.0.s8 %v860
    %v862 = vlaneseq
    %v863 = vshrl.u32 %v862, 7
    %v864 = vsub.s32 %v861, %v863
    %v865 = vrot.slane %v851, %v864
    %v866 = vcombine.low %v858, %v865
    %v867 = vcombine.low %v767, %v769
    %v868 = vcombine.low %v838, %v840
    %v870 = vunpack.c.l.s4 1983009808
    %v871 = vunpack.c.0.s8 %v870
    %v872 = vlaneseq
    %v873 = vshrl.u32 %v872, 7
    %v874 = vsub.s32 %v871, %v873
    %v875 = vrot.slane %v867, %v874
    %v877 = vunpack.c.l.s4 1983009808
    %v878 = vunpack.c.0.s8 %v877
    %v879 = vlaneseq
    %v880 = vshrl.u32 %v879, 7
    %v881 = vsub.s32 %v878, %v880
    %v882 = vrot.slane %v868, %v881
    %v883 = vcombine.low %v875, %v882
    %886 = vst [vmem:[#allocation7] sm:$0xff] %v866
    %887 = vst [vmem:[#allocation7 + $0x8] sm:$0xff] %v883
    // Predicated region
    $region18: #{tpu_custom_call.1} parent=1 // pred_check
      _
    $region19: #{tpu_custom_call.1} parent=1 // pred_check_branch
      %889 = sbr.rel (0) target = $region21
    $region20: #{tpu_custom_call.1} parent=1 // pred_region
      %s891 = ssub.s32 256, 256
      %892 = vsyncadd [#allocation4], %s891
      %s894 = sshll.u32 [#allocation7], 4
      %s895 = int_to_ptr.vmem [resolvable:$true] %s894
      %897 = dma.vmem_to_hbm [thread:$0]  %s895, 256, %s2, [#allocation4]
    $region21: #{tpu_custom_call.1} parent=1 // pred_fallthru
      _
    // Predicated region
    $region22: #{tpu_custom_call.1} parent=1 // pred_check
      _
    $region23: #{tpu_custom_call.1} parent=1 // pred_check_branch
      %899 = sbr.rel (0) target = $region25
    $region24: #{tpu_custom_call.1} parent=1 // pred_region
      %900 = dma.done [#allocation4], 256
    $region25: #{tpu_custom_call.1} parent=1 // pred_fallthru
      _
    %901 = vsyncpa [#allocation3], 1
    %902 = vsyncpa [#allocation6], 1
    %903 = vsyncpa [#allocation4], 1

</llo_original>
